<compile_context>
chip_gen: v5e
topology: v5e:2x2
jax: 0.10.0
libtpu: 0.0.40
codegen_flags: <defaults>
</compile_context>

<pallas_src>
import math

import jax
import jax.numpy as jnp
from jax import lax
from jax.experimental import pallas as pl
from jax.experimental.pallas import tpu as pltpu

D_MODEL = 128       # matches the module-level d_model in the reference file
MAX_LEN = 5000
DROPOUT_P = 0.1

TS_MAX = 2048                    # max seq rows per tile (mult. of 16 for bf16)
TARGET_TILE_BYTES = 2 * 1024 * 1024   # ~2 MiB x-tile target per grid step


def make_pe_table(max_len=MAX_LEN, d_model=D_MODEL, dtype=jnp.float32):
    """Deterministic sinusoidal table, identical to the torch __init__ buffer."""
    position = jnp.arange(max_len, dtype=jnp.float32)[:, None]            # (L, 1)
    div_term = jnp.exp(
        jnp.arange(0, d_model, 2, dtype=jnp.float32)
        * (-math.log(10000.0) / d_model)
    )                                                                      # (D/2,)
    angles = position * div_term                                           # (L, D/2)
    pe = jnp.zeros((max_len, d_model), jnp.float32)
    pe = pe.at[:, 0::2].set(jnp.sin(angles))
    pe = pe.at[:, 1::2].set(jnp.cos(angles))
    return pe.astype(dtype)


# ----------------------------- kernels ---------------------------------------


def _pe_add_eval_kernel(x_ref, pe_ref, o_ref):
    # x_ref/o_ref: (Bb, ts, D); pe_ref: (ts, D).  Eval-mode dropout is identity.
    # The rank-3 broadcast is a VMEM re-read on the VPU -- free, kernel is
    # HBM-bandwidth bound.
    o_ref[...] = x_ref[...] + pe_ref[...][None, :, :]


def _make_train_kernel(dropout_p, bb, ts, d, s_total):
    """Add + dropout.  Mask from a murmur-style hash of (global index, seed)."""
    scale = 1.0 / (1.0 - dropout_p)                          # python float literal
    # drop an element iff its uniform 31-bit draw is below p * 2^31
    drop_threshold = min(int(round(dropout_p * 2147483648.0)), 2147483647)
    # murmur3 fmix32 constants, pre-wrapped to signed int32
    GOLD = -1640531527       # 0x9E3779B1
    MIX1 = -2049430025       # 0x85ebca6b
    MIX2 = -1028477379       # 0xc2b2ae35

    def kernel(seed_ref, x_ref, pe_ref, o_ref):
        s = pl.program_id(0)
        b = pl.program_id(1)

        y = x_ref[...] + pe_ref[...][None, :, :]

        shape = (bb, ts, d)
        bi = lax.broadcasted_iota(jnp.int32, shape, 0) + b * bb
        si = lax.broadcasted_iota(jnp.int32, shape, 1) + s * ts
        di = lax.broadcasted_iota(jnp.int32, shape, 2)
        # global flat element index -> mask is independent of the tiling
        gidx = (bi * s_total + si) * d + di

        # murmur3 finalizer; arithmetic shift + mask == logical shift on int32
        h = gidx * GOLD + seed_ref[0]
        h = h ^ ((h >> 16) & 0xFFFF)
        h = h * MIX1
        h = h ^ ((h >> 13) & 0x7FFFF)
        h = h * MIX2
        h = h ^ ((h >> 16) & 0xFFFF)
        keep = (h & 0x7FFFFFFF) >= drop_threshold            # P(keep) = 1 - p

        # Fold the 1/(1-p) scale into a single select + multiply.
        o_ref[...] = jnp.where(keep, y * scale, 0.0).astype(o_ref.dtype)

    return kernel


# ----------------------------- wrapper ----------------------------------------


def _choose_tiles(B, S, D, itemsize):
    # Seq tile: full S when small (block == full dim is always layout-legal),
    # else 2048 rows (multiple of 8/16; keeps double-buffered VMEM ~<= 10 MiB).
    ts = S if S <= TS_MAX else TS_MAX
    # Batch block: grow the per-step tile to ~2 MiB so the ~0.35 us grid-step
    # overhead is amortized (critical for small S / fast-HBM v7x).
    row_bytes = ts * D * itemsize
    bb = max(1, min(B, TARGET_TILE_BYTES // row_bytes))
    return int(bb), int(ts)


def positional_encoding_forward(x, pe_table, *, training=False,
                                dropout_p=DROPOUT_P, seed=0):
    """JAX/Pallas equivalent of PositionalEncoding.forward."""
    B, S, D = x.shape
    assert S <= pe_table.shape[0], "sequence longer than max_len"
    # TODO(synk): torch would promote bf16 x + f32 pe to f32; here the output
    # stays in x.dtype (documented semantic difference, irrelevant for f32).
    if pe_table.dtype != x.dtype:
        pe_table = pe_table.astype(x.dtype)   # no-op when table built in x.dtype

    itemsize = jnp.dtype(x.dtype).itemsize
    bb, ts = _choose_tiles(B, S, D, itemsize)
    n_s = pl.cdiv(S, ts)
    n_b = pl.cdiv(B, bb)

    # grid = (seq_tiles, batch_tiles): batch innermost, so the pe block index
    # is unchanged across consecutive steps and Pallas skips its re-DMA.
    grid = (n_s, n_b)
    x_spec = pl.BlockSpec((bb, ts, D), lambda s, b, *_: (b, s, 0))

    if ts % 8 == 0:
        # Fast path: pass the full MAX_LEN table; the index_map selects rows.
        # No per-call slice/cast op before the kernel.
        pe_in = pe_table
        pe_spec = pl.BlockSpec((ts, D), lambda s, b, *_: (s, 0))
    else:
        # ts == S and S not a multiple of 8: block must equal full array dims,
        # so slice the table once (prefix slice, no cast).
        pe_in = pe_table[:S, :]
        pe_spec = pl.BlockSpec((S, D), lambda s, b, *_: (0, 0))

    out_shape = jax.ShapeDtypeStruct((B, S, D), x.dtype)
    cparams = pltpu.CompilerParams(
        dimension_semantics=("parallel", "parallel"))
    cost = pl.CostEstimate(
        flops=3 * B * S * D,
        transcendentals=0,
        bytes_accessed=(2 * B * S * D + S * D) * itemsize)

    if (not training) or dropout_p == 0.0:
        return pl.pallas_call(
            _pe_add_eval_kernel,
            out_shape=out_shape,
            grid_spec=pltpu.PrefetchScalarGridSpec(
                num_scalar_prefetch=0,
                grid=grid,
                in_specs=[x_spec, pe_spec],
                out_specs=x_spec,
            ),
            compiler_params=cparams,
            cost_estimate=cost,
        )(x, pe_in)

    # Training mode: Bernoulli(keep=1-p) mask generated in-kernel from an
    # integer hash of (global element index, seed).
    # TODO(synk): mask cannot bit-match torch's CPU/CUDA RNG stream, only its
    # distribution (keep-prob 1-p, kept values scaled by 1/(1-p)).
    seed_arr = jnp.array([seed], dtype=jnp.int32)
    return pl.pallas_call(
        _make_train_kernel(dropout_p, bb, ts, D, S),
        out_shape=out_shape,
        grid_spec=pltpu.PrefetchScalarGridSpec(
            num_scalar_prefetch=1,           # seed lands in SMEM
            grid=grid,
            in_specs=[x_spec, pe_spec],
            out_specs=x_spec,
        ),
        compiler_params=cparams,
        cost_estimate=cost,
    )(seed_arr, x, pe_in)


# ------------------------------- main ------------------------------------------


if __name__ == "__main__":
    key = jax.random.PRNGKey(0)
    B, S, D = 2, 8, D_MODEL                     # small seq, d_model fixed at 128
    x = jax.random.normal(key, (B, S, D), dtype=jnp.float32)

    pe_table = make_pe_table()                  # built once, already in model dtype

    # Eval mode (dropout = identity): must match the analytic reference exactly.
    y = positional_encoding_forward(x, pe_table, training=False)
    y = jax.block_until_ready(y)
    ref = x + pe_table[:S, :][None, :, :]
    assert y.shape == (B, S, D) and y.dtype == x.dtype
    assert jnp.allclose(y, ref, atol=1e-6), "eval-mode mismatch vs reference"

    # Eval mode with a seq length that is not a multiple of 8 (fallback pe path).
    S2 = 20
    x2 = jax.random.normal(jax.random.PRNGKey(1), (B, S2, D), dtype=jnp.float32)
    y2 = jax.block_until_ready(
        positional_encoding_forward(x2, pe_table, training=False))
    ref2 = x2 + pe_table[:S2, :][None, :, :]
    assert jnp.allclose(y2, ref2, atol=1e-6), "eval-mode (S=20) mismatch"

    # Train mode (dropout mask drawn in-kernel from the hash-based PRNG).
    y_train = positional_encoding_forward(x, pe_table, training=True, seed=42)
    y_train = jax.block_until_ready(y_train)
    assert y_train.shape == (B, S, D) and y_train.dtype == x.dtype
    # Every output element must be either dropped (0) or kept & scaled by 1/(1-p).
    scaled_ref = ref * (1.0 / (1.0 - DROPOUT_P))
    is_zero = jnp.isclose(y_train, 0.0, atol=1e-6)
    is_kept = jnp.isclose(y_train, scaled_ref, atol=1e-5)
    assert bool(jnp.all(is_zero | is_kept)), \
        "train-mode output not of form {0, (x+pe)/(1-p)}"
    # Drop fraction should be near p = 0.1 (very loose band; ~13 sigma).
    drop_frac = float(jnp.mean(is_zero.astype(jnp.float32)))
    assert 0.01 < drop_frac < 0.30, f"dropout fraction {drop_frac} implausible"

    print("KERNEL_OK")
</pallas_src>

<mosaic_0001>
module attributes {stable_mosaic.version = 11 : i64} {
  func.func @_pe_add_eval_kernel(%arg0: i32, %arg1: i32, %arg2: memref<2x8x128xf32, #tpu.memory_space<vmem>>, %arg3: memref<8x128xf32, #tpu.memory_space<vmem>>, %arg4: memref<2x8x128xf32, #tpu.memory_space<vmem>>) attributes {dimension_semantics = [#tpu.dimension_semantics<parallel>, #tpu.dimension_semantics<parallel>], iteration_bounds = array<i64: 1, 1>, scalar_prefetch = 0 : i64, scratch_operands = 0 : i64, tpu.core_type = #tpu.core_type<tc>, window_params = [{transform_indices = @transform_0, window_bounds = array<i64: 2, 8, 128>}, {transform_indices = @transform_1, window_bounds = array<i64: 8, 128>}, {transform_indices = @transform_2, window_bounds = array<i64: 2, 8, 128>}]} {
    %c0 = arith.constant 0 : index
    %c0_0 = arith.constant 0 : index
    %c0_1 = arith.constant 0 : index
    %0 = vector.load %arg2[%c0, %c0_0, %c0_1] : memref<2x8x128xf32, #tpu.memory_space<vmem>>, vector<2x8x128xf32>
    %c0_2 = arith.constant 0 : index
    %c0_3 = arith.constant 0 : index
    %1 = vector.load %arg3[%c0_2, %c0_3] : memref<8x128xf32, #tpu.memory_space<vmem>>, vector<8x128xf32>
    %2 = vector.shape_cast %1 : vector<8x128xf32> to vector<1x8x128xf32>
    %3 = vector.broadcast %2 : vector<1x8x128xf32> to vector<2x8x128xf32>
    %4 = arith.addf %0, %3 : vector<2x8x128xf32>
    %c0_4 = arith.constant 0 : index
    %c0_5 = arith.constant 0 : index
    %c0_6 = arith.constant 0 : index
    %5 = vector.load %arg4[%c0_4, %c0_5, %c0_6] : memref<2x8x128xf32, #tpu.memory_space<vmem>>, vector<2x8x128xf32>
    tpu.vector_store %arg4[%c0_4, %c0_5, %c0_6], %4 {strides = array<i32>} : memref<2x8x128xf32, #tpu.memory_space<vmem>>, vector<2x8x128xf32>,
    return
  }
  func.func @transform_0(%arg0: i32, %arg1: i32) -> (i32, i32, i32) {
    %c0_i32 = arith.constant 0 : i32
    %c0_i32_0 = arith.constant 0 : i32
    return %arg1, %arg0, %c0_i32 : i32, i32, i32
  }
  func.func @transform_1(%arg0: i32, %arg1: i32) -> (i32, i32) {
    %c0_i32 = arith.constant 0 : i32
    %c0_i32_0 = arith.constant 0 : i32
    return %arg0, %c0_i32 : i32, i32
  }
  func.func @transform_2(%arg0: i32, %arg1: i32) -> (i32, i32, i32) {
    %c0_i32 = arith.constant 0 : i32
    %c0_i32_0 = arith.constant 0 : i32
    return %arg1, %arg0, %c0_i32 : i32, i32, i32
  }
}

</mosaic_0001>

<llo_original>
// kernel: tpu_custom_call.1
$region0: #{tpu_custom_call.1}
  #allocation0 [shape = 'u32[]', space=smem, size = 0x4, offset = 0x4, fixed_abs, tag = 'smem constant byte address 0x4 - core index']
  #allocation1 [shape = 'u32[72,128]{1,0:T(1,128)}', space=vmem, size = 0x9000, scoped, tag = 'internal scratch']
  %s0 = inlined_call_operand.hbm [shape: f32[2,8,128], index: 0, kind: input, shape index: {}]
  %s1 = inlined_call_operand.hbm [shape: f32[5000,128], index: 1, kind: input, shape index: {}]
  %s2 = inlined_call_operand.hbm [shape: f32[2,8,128], index: 2, kind: output, shape index: {}]
  %s3 = sld [smem:[#allocation0]]
  $region26: #{tpu_custom_call.1} parent=0
    _
  %s5 = ssub.s32 1, %s3
  %s6 = scalar_select 0, %s5, %s3
  $region1: #{tpu_custom_call.1} parent=0
    #allocation2 [shape = 'u8[8192]{0}', space=vmem, size = 0x2000, scoped, tag = 'input window, operand 0, single buffered']
    #allocation3 [shape = 's32[1]{0}', space=sflag, size = 0x4, scoped, tag = 'scoped memory for tpu_custom_call.1']
    #allocation4 [shape = 's32[1]{0}', space=sflag, size = 0x4, scoped, tag = 'scoped memory for tpu_custom_call.1']
    #allocation5 [shape = 'u8[4096]{0}', space=vmem, size = 0x1000, scoped, tag = 'input window, operand 1, single buffered']
    #allocation6 [shape = 's32[1]{0}', space=sflag, size = 0x4, scoped, tag = 'scoped memory for tpu_custom_call.1']
    #allocation7 [shape = 'u8[8192]{0}', space=vmem, size = 0x2000, scoped, tag = 'output window, operand 0, single buffered']
    %7 = vsyncpa [#allocation3], 0
    %8 = vsyncpa [#allocation6], 0
    %9 = vsyncpa [#allocation4], 0
    // Predicated region
    $region2: #{tpu_custom_call.1} parent=1 // pred_check
      _
    $region3: #{tpu_custom_call.1} parent=1 // pred_check_branch
      %11 = sbr.rel (0) target = $region5
    $region4: #{tpu_custom_call.1} parent=1 // pred_region
      %13 = vsyncadd [#allocation3], 0
      %s14 = sshll.u32 %s0, 4
      %s15 = int_to_ptr.hbm [resolvable:$true] %s14
      %s16 = sshll.u32 [#allocation2], 4
      %s17 = int_to_ptr.vmem [resolvable:$true] %s16
      %22 = dma.hbm_to_vmem [thread:$0]  %s15, 256, %s17, [#allocation3], 128, 128, 8
    $region5: #{tpu_custom_call.1} parent=1 // pred_fallthru
      _
    // Predicated region
    $region6: #{tpu_custom_call.1} parent=1 // pred_check
      _
    $region7: #{tpu_custom_call.1} parent=1 // pred_check_branch
      %24 = sbr.rel (0) target = $region9
    $region8: #{tpu_custom_call.1} parent=1 // pred_region
      %26 = vsyncadd [#allocation6], 0
      %s28 = sshll.u32 %s1, 4
      %s29 = int_to_ptr.hbm [resolvable:$true] %s28
      %s30 = sshll.u32 [#allocation5], 4
      %s31 = int_to_ptr.vmem [resolvable:$true] %s30
      %33 = dma.hbm_to_vmem [thread:$0]  %s29, 128, %s31, [#allocation6]
    $region9: #{tpu_custom_call.1} parent=1 // pred_fallthru
      _
    // Predicated region
    $region10: #{tpu_custom_call.1} parent=1 // pred_check
      _
    $region11: #{tpu_custom_call.1} parent=1 // pred_check_branch
      %35 = sbr.rel (0) target = $region13
    $region12: #{tpu_custom_call.1} parent=1 // pred_region
      %37 = dma.done [#allocation3], 256
    $region13: #{tpu_custom_call.1} parent=1 // pred_fallthru
      _
    // Predicated region
    $region14: #{tpu_custom_call.1} parent=1 // pred_check
      _
    $region15: #{tpu_custom_call.1} parent=1 // pred_check_branch
      %39 = sbr.rel (0) target = $region17
    $region16: #{tpu_custom_call.1} parent=1 // pred_region
      %41 = dma.done [#allocation6], 128
    $region17: #{tpu_custom_call.1} parent=1 // pred_fallthru
      _
    %v42 = vld [vmem:[#allocation2] sm:$0xff]
    %v43 = vld [vmem:[#allocation2 + $0x8] sm:$0xff]
    %v44 = vld [vmem:[#allocation5] sm:$0xff]
    %v45 = vadd.f32 %v42, %v44
    %v46 = vadd.f32 %v43, %v44
    %47 = vst [vmem:[#allocation7] sm:$0xff] %v45
    %48 = vst [vmem:[#allocation7 + $0x8] sm:$0xff] %v46
    // Predicated region
    $region18: #{tpu_custom_call.1} parent=1 // pred_check
      _
    $region19: #{tpu_custom_call.1} parent=1 // pred_check_branch
      %50 = sbr.rel (0) target = $region21
    $region20: #{tpu_custom_call.1} parent=1 // pred_region
      %52 = vsyncadd [#allocation4], 0
      %s53 = sshll.u32 [#allocation7], 4
      %s54 = int_to_ptr.vmem [resolvable:$true] %s53
      %s55 = sshll.u32 %s2, 4
      %s56 = int_to_ptr.hbm [resolvable:$true] %s55
      %61 = dma.vmem_to_hbm [thread:$0]  %s54, 256, %s56, [#allocation4], 128, 128, 8
    $region21: #{tpu_custom_call.1} parent=1 // pred_fallthru
      _
    // Predicated region
    $region22: #{tpu_custom_call.1} parent=1 // pred_check
      _
    $region23: #{tpu_custom_call.1} parent=1 // pred_check_branch
      %63 = sbr.rel (0) target = $region25
    $region24: #{tpu_custom_call.1} parent=1 // pred_region
      %65 = dma.done [#allocation4], 256
    $region25: #{tpu_custom_call.1} parent=1 // pred_fallthru
      _
    %66 = vsyncpa [#allocation3], 1
    %67 = vsyncpa [#allocation6], 1
    %68 = vsyncpa [#allocation4], 1

</llo_original>
